<compile_context>
chip_gen: v6e
topology: v6e:2x2x1
jax: 0.10.0
libtpu: 0.0.40
codegen_flags: <defaults>
</compile_context>

<pallas_src>
import functools

import jax
import jax.numpy as jnp
from jax.experimental import pallas as pl
from jax.experimental.pallas import tpu as pltpu

NEG_SLOPE = 0.33
BN_EPS = 1e-5
SOFTPLUS_THRESHOLD = 20.0
DEFAULT_TILE_ROWS = 2048          # per-grid-step overhead ~0.35us; big tiles win
VMEM_LIMIT_BYTES = 32 * 1024 * 1024   # actual footprint ~4-6 MiB at 2048 rows


def _round_up(x, m):
    return (x + m - 1) // m * m


def _leaky_relu(x):
    # slope < 1  =>  leaky_relu(x) == max(x, slope*x): vmax+vmul (2 VALU slots)
    # instead of cmp+mul+select (3).
    return jnp.maximum(x, NEG_SLOPE * x)


def _softplus(z):
    sp = jnp.log1p(jnp.exp(jnp.minimum(z, SOFTPLUS_THRESHOLD)))
    return jnp.where(z > SOFTPLUS_THRESHOLD, z, sp)


def _native_bf16_vpu():
    """True on chips whose VPU/EUP handle bf16 natively (v6e, v7x)."""
    try:
        kind = jax.devices()[0].device_kind.lower()
    except Exception:
        return False
    return ("v6" in kind) or ("v7" in kind)


def _stats_kernel(x_ref, w1_ref, b1_ref, g2_ref, be2_ref,
                  scale_ref, shift_ref, sum_ref, sq_ref, *,
                  n_valid, tile_rows, compute_dtype):
    """Pass 1: global (batch) stats of LeakyReLU(x @ w1 + b1); the folded
    per-feature BatchNorm scale/shift is emitted on the final grid step."""
    i = pl.program_id(0)
    last = pl.num_programs(0) - 1

    @pl.when(i == 0)
    def _():
        sum_ref[...] = jnp.zeros_like(sum_ref)
        sq_ref[...] = jnp.zeros_like(sq_ref)

    x = x_ref[...].astype(compute_dtype)
    h = jnp.dot(x, w1_ref[...], preferred_element_type=jnp.float32) + b1_ref[...]
    h = _leaky_relu(h)

    @pl.when(i < last)
    def _():
        # Interior tiles: unmasked accumulation (no per-element mask math).
        sum_ref[...] += jnp.sum(h, axis=0, keepdims=True)
        sq_ref[...] += jnp.sum(h * h, axis=0, keepdims=True)

    @pl.when(i == last)
    def _():
        # Only the (possibly partial) final tile pays for row masking.  Use
        # jnp.where (not a multiplicative mask) so garbage out-of-bounds rows
        # (NaN/Inf) cannot poison the global statistics.
        row = jax.lax.broadcasted_iota(jnp.int32, (tile_rows, 1), 0) + i * tile_rows
        hm = jnp.where(row < n_valid, h, 0.0)
        s = sum_ref[...] + jnp.sum(hm, axis=0, keepdims=True)
        q = sq_ref[...] + jnp.sum(hm * hm, axis=0, keepdims=True)
        inv_n = 1.0 / n_valid
        mean = s * inv_n
        var = jnp.maximum(q * inv_n - mean * mean, 0.0)   # biased (training) var
        scale = g2_ref[...] * jax.lax.rsqrt(var + BN_EPS)
        scale_ref[...] = scale
        shift_ref[...] = be2_ref[...] - mean * scale


def _momentum_kernel(x_ref, w1_ref, b1_ref, w2_ref, b2_ref, w3_ref, b3_ref,
                     o_ref, *, compute_dtype, ew_dtype):
    """Pass 2: linear1 -> LeakyReLU -> linear2(BN pre-folded) -> LeakyReLU ->
    linear3 -> softplus for one batch tile.  MXU accumulates in f32; the
    elementwise chain runs in `ew_dtype` (bf16 on v6e/v7x, f32 otherwise)."""
    x = x_ref[...].astype(compute_dtype)

    h = jnp.dot(x, w1_ref[...], preferred_element_type=jnp.float32)
    h = _leaky_relu(h.astype(ew_dtype) + b1_ref[...])

    h = jnp.dot(h.astype(compute_dtype), w2_ref[...],
                preferred_element_type=jnp.float32)
    h = _leaky_relu(h.astype(ew_dtype) + b2_ref[...])

    # linear3 always on the MXU (K=128 contraction), even for num_output == 1:
    # the MXU/vex slot has slack while the VPU/XLU is the binding unit.
    z = jnp.dot(h.astype(compute_dtype), w3_ref[...],
                preferred_element_type=jnp.float32) + b3_ref[...]

    o_ref[...] = _softplus(z).astype(o_ref.dtype)


def momentum_net_forward(x, params, *, compute_dtype=jnp.bfloat16,
                         elementwise_dtype=None, tile_rows=None):
    """x: (N, num_input) float32. params: dict of weights (see init_params)."""
    n, num_input = x.shape
    num_hidden = params["w1"].shape[1]
    num_output = params["w3"].shape[1]

    if elementwise_dtype is None:
        if (jnp.dtype(compute_dtype) == jnp.dtype(jnp.bfloat16)
                and _native_bf16_vpu()):
            elementwise_dtype = jnp.bfloat16
        else:
            elementwise_dtype = jnp.float32
    ew_dtype = elementwise_dtype

    if tile_rows is None:
        tile_rows = min(DEFAULT_TILE_ROWS, _round_up(max(n, 1), 8))
    assert tile_rows % 8 == 0, "tile_rows must be a multiple of 8 (sublane)"
    grid = (pl.cdiv(n, tile_rows),)   # no jnp.pad: Pallas handles partial blocks

    # MXU operands in compute_dtype; f32 accumulation via preferred_element_type.
    w1 = params["w1"].astype(compute_dtype)

    def const(shape):
        return pl.BlockSpec(shape, lambda i: (0, 0))

    x_spec = pl.BlockSpec((tile_rows, num_input), lambda i: (i, 0))

    if n > 1:
        stats_kernel = functools.partial(
            _stats_kernel, n_valid=n, tile_rows=tile_rows,
            compute_dtype=compute_dtype)
        scale, shift = pl.pallas_call(
            stats_kernel,
            grid=grid,
            in_specs=[x_spec,
                      const((num_input, num_hidden)),
                      const((1, num_hidden)),
                      const((1, num_hidden)),
                      const((1, num_hidden))],
            out_specs=(const((1, num_hidden)), const((1, num_hidden))),
            out_shape=(jax.ShapeDtypeStruct((1, num_hidden), jnp.float32),
                       jax.ShapeDtypeStruct((1, num_hidden), jnp.float32)),
            scratch_shapes=[pltpu.VMEM((1, num_hidden), jnp.float32),
                            pltpu.VMEM((1, num_hidden), jnp.float32)],
            compiler_params=pltpu.CompilerParams(
                dimension_semantics=("arbitrary",),   # resident accumulator
                vmem_limit_bytes=VMEM_LIMIT_BYTES),
        )(x, w1, params["b1"], params["g2"], params["be2"])
        # Fold the BN affine into linear2 (two tiny (H,H)/(1,H) ops; XLA fuses):
        #   (h*scale + shift) @ w2 + b2 == h @ (scale_col * w2) + (shift@w2 + b2)
        w2f = (scale.reshape(num_hidden, 1) * params["w2"]).astype(compute_dtype)
        b2f = (shift @ params["w2"] + params["b2"]).astype(ew_dtype)
    else:
        # Batch of one: torch skips norm2 entirely -> identity fold, no pass 1.
        w2f = params["w2"].astype(compute_dtype)
        b2f = params["b2"].astype(ew_dtype)

    cost = pl.CostEstimate(
        flops=2 * n * (num_input * num_hidden + num_hidden * num_hidden
                       + num_hidden * num_output),
        transcendentals=2 * n * num_output,
        bytes_accessed=4 * n * (num_input + num_output)
                       + 2 * num_hidden * (num_input + num_hidden + num_output + 4),
    )

    kernel = functools.partial(_momentum_kernel, compute_dtype=compute_dtype,
                               ew_dtype=ew_dtype)
    out = pl.pallas_call(
        kernel,
        grid=grid,
        in_specs=[x_spec,
                  const((num_input, num_hidden)), const((1, num_hidden)),
                  const((num_hidden, num_hidden)), const((1, num_hidden)),
                  const((num_hidden, num_output)), const((1, num_output))],
        out_specs=pl.BlockSpec((tile_rows, num_output), lambda i: (i, 0)),
        out_shape=jax.ShapeDtypeStruct((n, num_output), jnp.float32),
        compiler_params=pltpu.CompilerParams(
            dimension_semantics=("parallel",),        # megacore-shardable
            vmem_limit_bytes=VMEM_LIMIT_BYTES),
        cost_estimate=cost,
    )(x, w1, params["b1"].astype(ew_dtype), w2f, b2f,
      params["w3"].astype(compute_dtype), params["b3"])

    return out


def init_params(key, num_input, num_hidden=128, num_output=1):
    """Deterministic synthetic parameter init (PyTorch-like uniform ranges)."""
    ks = jax.random.split(key, 6)

    def linear(kw, kb, fan_in, fan_out):
        bound = 1.0 / jnp.sqrt(fan_in)
        # stored pre-transposed: (in, out)
        w = jax.random.uniform(kw, (fan_in, fan_out), jnp.float32, -bound, bound)
        b = jax.random.uniform(kb, (1, fan_out), jnp.float32, -bound, bound)
        return w, b

    w1, b1 = linear(ks[0], ks[1], num_input, num_hidden)
    w2, b2 = linear(ks[2], ks[3], num_hidden, num_hidden)
    w3, b3 = linear(ks[4], ks[5], num_hidden, num_output)
    g2 = jnp.ones((1, num_hidden), jnp.float32)    # BatchNorm1d default gamma
    be2 = jnp.zeros((1, num_hidden), jnp.float32)  # BatchNorm1d default beta
    return dict(w1=w1, b1=b1, w2=w2, b2=b2, w3=w3, b3=b3, g2=g2, be2=be2)


def momentum_net_reference(x, params):
    """Pure-JAX f32 reference of the same forward semantics."""
    h = x @ params["w1"] + params["b1"]
    h = jnp.where(h >= 0, h, NEG_SLOPE * h)
    if x.shape[0] > 1:
        mean = jnp.mean(h, axis=0, keepdims=True)
        var = jnp.mean((h - mean) ** 2, axis=0, keepdims=True)
        h = (h - mean) / jnp.sqrt(var + BN_EPS) * params["g2"] + params["be2"]
    h = h @ params["w2"] + params["b2"]
    h = jnp.where(h >= 0, h, NEG_SLOPE * h)
    z = h @ params["w3"] + params["b3"]
    return jnp.where(z > SOFTPLUS_THRESHOLD, z,
                     jnp.log1p(jnp.exp(jnp.minimum(z, SOFTPLUS_THRESHOLD))))


if __name__ == "__main__":
    key = jax.random.PRNGKey(0)
    k_x, k_p = jax.random.split(key)

    NUM_INPUT, NUM_HIDDEN, NUM_OUTPUT, BATCH = 16, 128, 1, 20

    x = jax.random.normal(k_x, (BATCH, NUM_INPUT), jnp.float32)
    params = init_params(k_p, NUM_INPUT, NUM_HIDDEN, NUM_OUTPUT)

    ref = momentum_net_reference(x, params)

    # 1) Exact-semantics check: f32 math, forced 8-row tiles -> 3-step grid with
    #    a partial final tile (exercises cross-tile BN stats + OOB-row masking
    #    + BN-into-linear2 folding).
    out_f32 = jax.block_until_ready(
        momentum_net_forward(x, params, compute_dtype=jnp.float32, tile_rows=8))
    assert out_f32.shape == (BATCH, NUM_OUTPUT), out_f32.shape
    assert jnp.allclose(out_f32, ref, atol=1e-3, rtol=1e-3), (out_f32, ref)

    # 2) Default fast path: bf16 MXU operands, auto tile size / elementwise dtype.
    out_bf16 = jax.block_until_ready(momentum_net_forward(x, params))
    assert out_bf16.shape == (BATCH, NUM_OUTPUT), out_bf16.shape
    assert jnp.allclose(out_bf16, ref, atol=1e-1, rtol=5e-2), (out_bf16, ref)

    # 3) Batch-of-one path (torch skips norm2 when x.shape[0] == 1): no stats pass.
    x1 = x[:1]
    out_1 = jax.block_until_ready(
        momentum_net_forward(x1, params, compute_dtype=jnp.float32))
    ref_1 = momentum_net_reference(x1, params)
    assert out_1.shape == (1, NUM_OUTPUT), out_1.shape
    assert jnp.allclose(out_1, ref_1, atol=1e-3, rtol=1e-3), (out_1, ref_1)

    print("KERNEL_OK")
</pallas_src>

<mosaic_0001>
module attributes {stable_mosaic.version = 11 : i64} {
  func.func @_stats_kernel(%arg0: i32, %arg1: memref<8x16xf32, #tpu.memory_space<vmem>>, %arg2: memref<16x128xf32, #tpu.memory_space<vmem>>, %arg3: memref<1x128xf32, #tpu.memory_space<vmem>>, %arg4: memref<1x128xf32, #tpu.memory_space<vmem>>, %arg5: memref<1x128xf32, #tpu.memory_space<vmem>>, %arg6: memref<1x128xf32, #tpu.memory_space<vmem>>, %arg7: memref<1x128xf32, #tpu.memory_space<vmem>>, %arg8: memref<1x128xf32, #tpu.memory_space<vmem>>, %arg9: memref<1x128xf32, #tpu.memory_space<vmem>>) attributes {dimension_semantics = [#tpu.dimension_semantics<arbitrary>], iteration_bounds = array<i64: 3>, scalar_prefetch = 0 : i64, scratch_operands = 2 : i64, tpu.core_type = #tpu.core_type<tc>, window_params = [{transform_indices = @transform_0, window_bounds = array<i64: 8, 16>}, {pipeline_mode = #tpu.pipeline_mode<synchronous>, transform_indices = @transform_1, window_bounds = array<i64: 16, 128>}, {pipeline_mode = #tpu.pipeline_mode<synchronous>, transform_indices = @transform_2, window_bounds = array<i64: 1, 128>}, {pipeline_mode = #tpu.pipeline_mode<synchronous>, transform_indices = @transform_3, window_bounds = array<i64: 1, 128>}, {pipeline_mode = #tpu.pipeline_mode<synchronous>, transform_indices = @transform_4, window_bounds = array<i64: 1, 128>}, {pipeline_mode = #tpu.pipeline_mode<synchronous>, transform_indices = @transform_5, window_bounds = array<i64: 1, 128>}, {pipeline_mode = #tpu.pipeline_mode<synchronous>, transform_indices = @transform_6, window_bounds = array<i64: 1, 128>}]} {
    %c0_i32 = arith.constant 0 : i32
    %0 = arith.cmpi eq, %arg0, %c0_i32 : i32
    %1 = arith.extui %0 : i1 to i32
    %c0_i32_0 = arith.constant 0 : i32
    %2 = arith.cmpi ne, %1, %c0_i32_0 : i32
    scf.if %2 {
      %cst_10 = arith.constant 0.000000e+00 : f32
      %18 = vector.broadcast %cst_10 : f32 to vector<1x128xf32>
      %c0_11 = arith.constant 0 : index
      %c0_12 = arith.constant 0 : index
      %19 = vector.load %arg8[%c0_11, %c0_12] : memref<1x128xf32, #tpu.memory_space<vmem>>, vector<1x128xf32>
      tpu.vector_store %arg8[%c0_11, %c0_12], %18 {strides = array<i32>} : memref<1x128xf32, #tpu.memory_space<vmem>>, vector<1x128xf32>,
      %cst_13 = arith.constant 0.000000e+00 : f32
      %20 = vector.broadcast %cst_13 : f32 to vector<1x128xf32>
      %c0_14 = arith.constant 0 : index
      %c0_15 = arith.constant 0 : index
      %21 = vector.load %arg9[%c0_14, %c0_15] : memref<1x128xf32, #tpu.memory_space<vmem>>, vector<1x128xf32>
      tpu.vector_store %arg9[%c0_14, %c0_15], %20 {strides = array<i32>} : memref<1x128xf32, #tpu.memory_space<vmem>>, vector<1x128xf32>,
    } else {
    }
    %c0 = arith.constant 0 : index
    %c0_1 = arith.constant 0 : index
    %3 = vector.load %arg1[%c0, %c0_1] : memref<8x16xf32, #tpu.memory_space<vmem>>, vector<8x16xf32>
    %c0_2 = arith.constant 0 : index
    %c0_3 = arith.constant 0 : index
    %4 = vector.load %arg2[%c0_2, %c0_3] : memref<16x128xf32, #tpu.memory_space<vmem>>, vector<16x128xf32>
    %cst = arith.constant dense<0.000000e+00> : vector<8x128xf32>
    %5 = tpu.matmul %3, %4, %cst {dimension_numbers = #tpu.dot_dimension_numbers<[1], [0], [0], [1], [0, 0, 1, 1], [], []>} : vector<8x16xf32>, vector<16x128xf32>, vector<8x128xf32> -> vector<8x128xf32>
    %c0_4 = arith.constant 0 : index
    %c0_5 = arith.constant 0 : index
    %6 = vector.load %arg3[%c0_4, %c0_5] : memref<1x128xf32, #tpu.memory_space<vmem>>, vector<1x128xf32>
    %7 = vector.broadcast %6 : vector<1x128xf32> to vector<8x128xf32>
    %8 = arith.addf %5, %7 : vector<8x128xf32>
    %cst_6 = arith.constant 3.300000e-01 : f32
    %9 = vector.broadcast %cst_6 : f32 to vector<8x128xf32>
    %10 = arith.mulf %9, %8 : vector<8x128xf32>
    %11 = arith.maximumf %8, %10 : vector<8x128xf32>
    %c2_i32 = arith.constant 2 : i32
    %12 = arith.cmpi slt, %arg0, %c2_i32 : i32
    %13 = arith.extui %12 : i1 to i32
    %c0_i32_7 = arith.constant 0 : i32
    %14 = arith.cmpi ne, %13, %c0_i32_7 : i32
    scf.if %14 {
      %c0_10 = arith.constant 0 : index
      %c0_11 = arith.constant 0 : index
      %18 = vector.load %arg8[%c0_10, %c0_11] : memref<1x128xf32, #tpu.memory_space<vmem>>, vector<1x128xf32>
      %cst_12 = arith.constant dense<0.000000e+00> : vector<128xf32>
      %19 = vector.multi_reduction <add>, %11, %cst_12 [0] : vector<8x128xf32> to vector<128xf32>
      %20 = vector.shape_cast %19 : vector<128xf32> to vector<1x128xf32>
      %21 = arith.addf %18, %20 : vector<1x128xf32>
      %c0_13 = arith.constant 0 : index
      %c0_14 = arith.constant 0 : index
      %22 = vector.load %arg8[%c0_13, %c0_14] : memref<1x128xf32, #tpu.memory_space<vmem>>, vector<1x128xf32>
      tpu.vector_store %arg8[%c0_13, %c0_14], %21 {strides = array<i32>} : memref<1x128xf32, #tpu.memory_space<vmem>>, vector<1x128xf32>,
      %c0_15 = arith.constant 0 : index
      %c0_16 = arith.constant 0 : index
      %23 = vector.load %arg9[%c0_15, %c0_16] : memref<1x128xf32, #tpu.memory_space<vmem>>, vector<1x128xf32>
      %24 = arith.mulf %11, %11 : vector<8x128xf32>
      %cst_17 = arith.constant dense<0.000000e+00> : vector<128xf32>
      %25 = vector.multi_reduction <add>, %24, %cst_17 [0] : vector<8x128xf32> to vector<128xf32>
      %26 = vector.shape_cast %25 : vector<128xf32> to vector<1x128xf32>
      %27 = arith.addf %23, %26 : vector<1x128xf32>
      %c0_18 = arith.constant 0 : index
      %c0_19 = arith.constant 0 : index
      %28 = vector.load %arg9[%c0_18, %c0_19] : memref<1x128xf32, #tpu.memory_space<vmem>>, vector<1x128xf32>
      tpu.vector_store %arg9[%c0_18, %c0_19], %27 {strides = array<i32>} : memref<1x128xf32, #tpu.memory_space<vmem>>, vector<1x128xf32>,
    } else {
    }
    %c2_i32_8 = arith.constant 2 : i32
    %15 = arith.cmpi eq, %arg0, %c2_i32_8 : i32
    %16 = arith.extui %15 : i1 to i32
    %c0_i32_9 = arith.constant 0 : i32
    %17 = arith.cmpi ne, %16, %c0_i32_9 : i32
    scf.if %17 {
      %18 = tpu.iota {dimensions = array<i32: 0>} : vector<8x1xi32>
      %c8_i32 = arith.constant 8 : i32
      %19 = arith.muli %arg0, %c8_i32 : i32
      %20 = vector.broadcast %19 : i32 to vector<8x1xi32>
      %21 = arith.addi %18, %20 : vector<8x1xi32>
      %c20_i32 = arith.constant 20 : i32
      %22 = vector.broadcast %c20_i32 : i32 to vector<8x1xi32>
      %23 = arith.cmpi slt, %21, %22 : vector<8x1xi32>
      %cst_10 = arith.constant 0.000000e+00 : f32
      %24 = vector.shape_cast %23 : vector<8x1xi1> to vector<8x1xi1>
      %25 = vector.broadcast %24 : vector<8x1xi1> to vector<8x128xi1>
      %26 = vector.broadcast %cst_10 : f32 to vector<8x128xf32>
      %27 = arith.select %25, %11, %26 : vector<8x128xi1>, vector<8x128xf32>
      %c0_11 = arith.constant 0 : index
      %c0_12 = arith.constant 0 : index
      %28 = vector.load %arg8[%c0_11, %c0_12] : memref<1x128xf32, #tpu.memory_space<vmem>>, vector<1x128xf32>
      %cst_13 = arith.constant dense<0.000000e+00> : vector<128xf32>
      %29 = vector.multi_reduction <add>, %27, %cst_13 [0] : vector<8x128xf32> to vector<128xf32>
      %30 = vector.shape_cast %29 : vector<128xf32> to vector<1x128xf32>
      %31 = arith.addf %28, %30 : vector<1x128xf32>
      %c0_14 = arith.constant 0 : index
      %c0_15 = arith.constant 0 : index
      %32 = vector.load %arg9[%c0_14, %c0_15] : memref<1x128xf32, #tpu.memory_space<vmem>>, vector<1x128xf32>
      %33 = arith.mulf %27, %27 : vector<8x128xf32>
      %cst_16 = arith.constant dense<0.000000e+00> : vector<128xf32>
      %34 = vector.multi_reduction <add>, %33, %cst_16 [0] : vector<8x128xf32> to vector<128xf32>
      %35 = vector.shape_cast %34 : vector<128xf32> to vector<1x128xf32>
      %36 = arith.addf %32, %35 : vector<1x128xf32>
      %cst_17 = arith.constant 5.000000e-02 : f32
      %37 = vector.broadcast %cst_17 : f32 to vector<1x128xf32>
      %38 = arith.mulf %31, %37 : vector<1x128xf32>
      %cst_18 = arith.constant 5.000000e-02 : f32
      %39 = vector.broadcast %cst_18 : f32 to vector<1x128xf32>
      %40 = arith.mulf %36, %39 : vector<1x128xf32>
      %41 = arith.mulf %38, %38 : vector<1x128xf32>
      %42 = arith.subf %40, %41 : vector<1x128xf32>
      %cst_19 = arith.constant 0.000000e+00 : f32
      %43 = vector.broadcast %cst_19 : f32 to vector<1x128xf32>
      %44 = arith.maximumf %42, %43 : vector<1x128xf32>
      %c0_20 = arith.constant 0 : index
      %c0_21 = arith.constant 0 : index
      %45 = vector.load %arg4[%c0_20, %c0_21] : memref<1x128xf32, #tpu.memory_space<vmem>>, vector<1x128xf32>
      %cst_22 = arith.constant 9.99999974E-6 : f32
      %46 = vector.broadcast %cst_22 : f32 to vector<1x128xf32>
      %47 = arith.addf %44, %46 : vector<1x128xf32>
      %48 = math.rsqrt %47 : vector<1x128xf32>
      %49 = arith.mulf %45, %48 : vector<1x128xf32>
      %c0_23 = arith.constant 0 : index
      %c0_24 = arith.constant 0 : index
      %50 = vector.load %arg6[%c0_23, %c0_24] : memref<1x128xf32, #tpu.memory_space<vmem>>, vector<1x128xf32>
      tpu.vector_store %arg6[%c0_23, %c0_24], %49 {strides = array<i32>} : memref<1x128xf32, #tpu.memory_space<vmem>>, vector<1x128xf32>,
      %c0_25 = arith.constant 0 : index
      %c0_26 = arith.constant 0 : index
      %51 = vector.load %arg5[%c0_25, %c0_26] : memref<1x128xf32, #tpu.memory_space<vmem>>, vector<1x128xf32>
      %52 = arith.mulf %38, %49 : vector<1x128xf32>
      %53 = arith.subf %51, %52 : vector<1x128xf32>
      %c0_27 = arith.constant 0 : index
      %c0_28 = arith.constant 0 : index
      %54 = vector.load %arg7[%c0_27, %c0_28] : memref<1x128xf32, #tpu.memory_space<vmem>>, vector<1x128xf32>
      tpu.vector_store %arg7[%c0_27, %c0_28], %53 {strides = array<i32>} : memref<1x128xf32, #tpu.memory_space<vmem>>, vector<1x128xf32>,
    } else {
    }
    return
  }
  func.func @transform_0(%arg0: i32) -> (i32, i32) {
    %c0_i32 = arith.constant 0 : i32
    %c0_i32_0 = arith.constant 0 : i32
    return %arg0, %c0_i32 : i32, i32
  }
  func.func @transform_1(%arg0: i32) -> (i32, i32) {
    %c0_i32 = arith.constant 0 : i32
    %c0_i32_0 = arith.constant 0 : i32
    %c0_i32_1 = arith.constant 0 : i32
    return %c0_i32, %c0_i32_0 : i32, i32
  }
  func.func @transform_2(%arg0: i32) -> (i32, i32) {
    %c0_i32 = arith.constant 0 : i32
    %c0_i32_0 = arith.constant 0 : i32
    %c0_i32_1 = arith.constant 0 : i32
    return %c0_i32, %c0_i32_0 : i32, i32
  }
  func.func @transform_3(%arg0: i32) -> (i32, i32) {
    %c0_i32 = arith.constant 0 : i32
    %c0_i32_0 = arith.constant 0 : i32
    %c0_i32_1 = arith.constant 0 : i32
    return %c0_i32, %c0_i32_0 : i32, i32
  }
  func.func @transform_4(%arg0: i32) -> (i32, i32) {
    %c0_i32 = arith.constant 0 : i32
    %c0_i32_0 = arith.constant 0 : i32
    %c0_i32_1 = arith.constant 0 : i32
    return %c0_i32, %c0_i32_0 : i32, i32
  }
  func.func @transform_5(%arg0: i32) -> (i32, i32) {
    %c0_i32 = arith.constant 0 : i32
    %c0_i32_0 = arith.constant 0 : i32
    %c0_i32_1 = arith.constant 0 : i32
    return %c0_i32, %c0_i32_0 : i32, i32
  }
  func.func @transform_6(%arg0: i32) -> (i32, i32) {
    %c0_i32 = arith.constant 0 : i32
    %c0_i32_0 = arith.constant 0 : i32
    %c0_i32_1 = arith.constant 0 : i32
    return %c0_i32, %c0_i32_0 : i32, i32
  }
}

</mosaic_0001>

<llo_original>
// kernel: tpu_custom_call.1
$region0: #{tpu_custom_call.1}
  #allocation0 [shape = 'u32[]', space=smem, size = 0x4, offset = 0x4, fixed_abs, tag = 'smem constant byte address 0x4 - core index']
  #allocation1 [shape = 'u32[144,128]{1,0:T(1,128)}', space=vmem, size = 0x12000, scoped, tag = 'internal scratch']
  #allocation2 [shape = 'f32[1,128]{1,0:T(1,128)}', space=vmem, size = 0x200, scoped, tag = 'scratch operand']
  #allocation3 [shape = 'f32[1,128]{1,0:T(1,128)}', space=vmem, size = 0x200, scoped, tag = 'scratch operand']
  %s0 = inlined_call_operand.vmem [shape: f32[20,16], index: 0, kind: input, shape index: {}]
  %s1 = inlined_call_operand.vmem [shape: f32[16,128], index: 1, kind: input, shape index: {}]
  %s2 = inlined_call_operand.vmem [shape: f32[1,128], index: 2, kind: input, shape index: {}]
  %s3 = inlined_call_operand.vmem [shape: f32[1,128], index: 3, kind: input, shape index: {}]
  %s4 = inlined_call_operand.vmem [shape: f32[1,128], index: 4, kind: input, shape index: {}]
  %s5 = inlined_call_operand.hbm [shape: f32[1,128], index: 5, kind: output, shape index: {0}]
  %s6 = inlined_call_operand.hbm [shape: f32[1,128], index: 6, kind: output, shape index: {1}]
  %7 = xla_tuple %s5, %s6
  %s8 = sld [smem:[#allocation0]]
  $region73: #{tpu_custom_call.1} parent=0
    _
  %s10 = ssub.s32 1, %s8
  %s11 = scalar_select 0, %s10, %s8
  $region1: #{tpu_custom_call.1} parent=0
    #allocation4 [shape = 'u8[512]{0}', space=vmem, size = 0x400, scoped, tag = 'output window, operand 0, single buffered']
    #allocation5 [shape = 's32[2]{0}', space=sflag, size = 0x8, scoped, tag = 'scoped memory for tpu_custom_call.1']
    #allocation6 [shape = 'u8[512]{0}', space=vmem, size = 0x400, scoped, tag = 'output window, operand 1, single buffered']
    #allocation7 [shape = 's32[1]{0}', space=sflag, size = 0x4, scoped, tag = 'scoped memory for tpu_custom_call.1']
    %12 = vsyncpa [#allocation5], 0
    %13 = vsyncpa [#allocation7], 0
    loop: start=0, step=1, limit=5
    $region2: #{tpu_custom_call.1} parent=1 // loop_pre_header
      _
    $region3: #{tpu_custom_call.1} parent=1 // loop_header
      %s15 = sphi 0, %s19
      %p16 = scmp.ge.s32.totalorder %s15, 5
      %s25 = sphi 0, %s27
      %s28 = sphi 0, %s25
      %s29 = sphi 0, %s28
      %s45 = sphi 0, %s29
      %s49 = sphi 0, %s49
      %s51 = sphi 0, %s49
      %s52 = sphi 0, %s51
      %s66 = sphi 0, %s52
      %s70 = sphi 0, %s70
      %s72 = sphi 0, %s70
      %s73 = sphi 0, %s72
      %s87 = sphi 0, %s73
      %s91 = sphi 0, %s91
      %s93 = sphi 0, %s91
      %s94 = sphi 0, %s93
      %s108 = sphi 0, %s94
      %s112 = sphi 0, %s112
      %s114 = sphi 0, %s112
      %s115 = sphi 0, %s114
      %s129 = sphi 0, %s115
      %s133 = sphi 0, %s133
      %s135 = sphi 0, %s133
      %s136 = sphi 0, %s135
      %s150 = sphi 0, %s136
      %s154 = sphi 0, %s154
      %s156 = sphi 0, %s154
      %s157 = sphi 0, %s156
      %s171 = sphi 0, %s157
    $region4: #{tpu_custom_call.1} parent=1 // loop_header_branch
      %18 = sbr.rel (%p16) target = $region8
    $region5: #{tpu_custom_call.1} parent=1 // loop_body
      %s20 = ssub.s32 %s15, 1
      %s21 = ssub.s32 %s15, 2
      %s22 = sadd.s32 %s15, 1
      %s23 = ssub.s32 %s15, %s22
      %p24 = scmp.eq.s32.totalorder %s23, 0
      %s26 = sadd.s32 %s25, 1
      %s27 = scalar_select %p24, %s25, %s26
      %p30 = pneg %p24
      %p31 = scmp.eq.s32.totalorder %s15, 2
      %p32 = por %p30, %p31
      %p33 = scmp.ne.s32.totalorder %s25, %s28
      %p34 = scmp.eq.s32.totalorder %s15, 0
      %p35 = por %p33, %p34
      %p36 = scmp.ne.s32.totalorder %s25, %s28
      %p37 = scmp.eq.s32.totalorder %s20, 2
      %p38 = por %p36, %p37
      %p39 = scmp.ne.s32.totalorder %s28, %s29
      %p40 = scmp.eq.s32.totalorder %s20, 0
      %p41 = por %p39, %p40
      %p42 = scmp.ne.s32.totalorder %s28, %s29
      %p43 = scmp.eq.s32.totalorder %s21, 2
      %p44 = por %p42, %p43
      %p46 = scmp.ne.s32.totalorder %s29, %s45
      %p47 = scmp.eq.s32.totalorder %s21, 0
      %p48 = por %p46, %p47
      %s50 = sadd.s32 %s49, 1
      %p53 = scmp.eq.s32.totalorder %s15, 2
      %p54 = scmp.ne.s32.totalorder %s49, %s51
      %p55 = scmp.eq.s32.totalorder %s15, 0
      %p56 = por %p54, %p55
      %p57 = scmp.ne.s32.totalorder %s49, %s51
      %p58 = scmp.eq.s32.totalorder %s20, 2
      %p59 = por %p57, %p58
      %p60 = scmp.ne.s32.totalorder %s51, %s52
      %p61 = scmp.eq.s32.totalorder %s20, 0
      %p62 = por %p60, %p61
      %p63 = scmp.ne.s32.totalorder %s51, %s52
      %p64 = scmp.eq.s32.totalorder %s21, 2
      %p65 = por %p63, %p64
      %p67 = scmp.ne.s32.totalorder %s52, %s66
      %p68 = scmp.eq.s32.totalorder %s21, 0
      %p69 = por %p67, %p68
      %s71 = sadd.s32 %s70, 1
      %p74 = scmp.eq.s32.totalorder %s15, 2
      %p75 = scmp.ne.s32.totalorder %s70, %s72
      %p76 = scmp.eq.s32.totalorder %s15, 0
      %p77 = por %p75, %p76
      %p78 = scmp.ne.s32.totalorder %s70, %s72
      %p79 = scmp.eq.s32.totalorder %s20, 2
      %p80 = por %p78, %p79
      %p81 = scmp.ne.s32.totalorder %s72, %s73
      %p82 = scmp.eq.s32.totalorder %s20, 0
      %p83 = por %p81, %p82
      %p84 = scmp.ne.s32.totalorder %s72, %s73
      %p85 = scmp.eq.s32.totalorder %s21, 2
      %p86 = por %p84, %p85
      %p88 = scmp.ne.s32.totalorder %s73, %s87
      %p89 = scmp.eq.s32.totalorder %s21, 0
      %p90 = por %p88, %p89
      %s92 = sadd.s32 %s91, 1
      %p95 = scmp.eq.s32.totalorder %s15, 2
      %p96 = scmp.ne.s32.totalorder %s91, %s93
      %p97 = scmp.eq.s32.totalorder %s15, 0
      %p98 = por %p96, %p97
      %p99 = scmp.ne.s32.totalorder %s91, %s93
      %p100 = scmp.eq.s32.totalorder %s20, 2
      %p101 = por %p99, %p100
      %p102 = scmp.ne.s32.totalorder %s93, %s94
      %p103 = scmp.eq.s32.totalorder %s20, 0
      %p104 = por %p102, %p103
      %p105 = scmp.ne.s32.totalorder %s93, %s94
      %p106 = scmp.eq.s32.totalorder %s21, 2
      %p107 = por %p105, %p106
      %p109 = scmp.ne.s32.totalorder %s94, %s108
      %p110 = scmp.eq.s32.totalorder %s21, 0
      %p111 = por %p109, %p110
      %s113 = sadd.s32 %s112, 1
      %p116 = scmp.eq.s32.totalorder %s15, 2
      %p117 = scmp.ne.s32.totalorder %s112, %s114
      %p118 = scmp.eq.s32.totalorder %s15, 0
      %p119 = por %p117, %p118
      %p120 = scmp.ne.s32.totalorder %s112, %s114
      %p121 = scmp.eq.s32.totalorder %s20, 2
      %p122 = por %p120, %p121
      %p123 = scmp.ne.s32.totalorder %s114, %s115
      %p124 = scmp.eq.s32.totalorder %s20, 0
      %p125 = por %p123, %p124
      %p126 = scmp.ne.s32.totalorder %s114, %s115
      %p127 = scmp.eq.s32.totalorder %s21, 2
      %p128 = por %p126, %p127
      %p130 = scmp.ne.s32.totalorder %s115, %s129
      %p131 = scmp.eq.s32.totalorder %s21, 0
      %p132 = por %p130, %p131
      %s134 = sadd.s32 %s133, 1
      %p137 = scmp.eq.s32.totalorder %s15, 2
      %p138 = scmp.ne.s32.totalorder %s133, %s135
      %p139 = scmp.eq.s32.totalorder %s15, 0
      %p140 = por %p138, %p139
      %p141 = scmp.ne.s32.totalorder %s133, %s135
      %p142 = scmp.eq.s32.totalorder %s20, 2
      %p143 = por %p141, %p142
      %p144 = scmp.ne.s32.totalorder %s135, %s136
      %p145 = scmp.eq.s32.totalorder %s20, 0
      %p146 = por %p144, %p145
      %p147 = scmp.ne.s32.totalorder %s135, %s136
      %p148 = scmp.eq.s32.totalorder %s21, 2
      %p149 = por %p147, %p148
      %p151 = scmp.ne.s32.totalorder %s136, %s150
      %p152 = scmp.eq.s32.totalorder %s21, 0
      %p153 = por %p151, %p152
      %s155 = sadd.s32 %s154, 1
      %p158 = scmp.eq.s32.totalorder %s15, 2
      %p159 = scmp.ne.s32.totalorder %s154, %s156
      %p160 = scmp.eq.s32.totalorder %s15, 0
      %p161 = por %p159, %p160
      %p162 = scmp.ne.s32.totalorder %s154, %s156
      %p163 = scmp.eq.s32.totalorder %s20, 2
      %p164 = por %p162, %p163
      %p165 = scmp.ne.s32.totalorder %s156, %s157
      %p166 = scmp.eq.s32.totalorder %s20, 0
      %p167 = por %p165, %p166
      %p168 = scmp.ne.s32.totalorder %s156, %s157
      %p169 = scmp.eq.s32.totalorder %s21, 2
      %p170 = por %p168, %p169
      %p172 = scmp.ne.s32.totalorder %s157, %s171
      %p173 = scmp.eq.s32.totalorder %s21, 0
      %p174 = por %p172, %p173
      %p175 = scmp.le.s32.totalorder 1, %s15
      %p176 = scmp.lt.s32.totalorder %s15, 4
      %p177 = pnand %p175, %p176
      %p178 = pneg %p177
      // Predicated region
      $region9: #{tpu_custom_call.1} parent=5 // pred_check
        _
      $region10: #{tpu_custom_call.1} parent=5 // pred_check_branch
        %180 = sbr.rel (%p177) target = $region12
      $region11: #{tpu_custom_call.1} parent=5 // pred_region
        %s181 = ssub.s32 %s15, 1
        // Predicated region
        $region13: #{tpu_custom_call.1} parent=11 // pred_check
          %p182 = pneg %p62
        $region14: #{tpu_custom_call.1} parent=11 // pred_check_branch
          %184 = sbr.rel (%p182) target = $region16
        $region15: #{tpu_custom_call.1} parent=11 // pred_region
          _
        $region16: #{tpu_custom_call.1} parent=11 // pred_fallthru
          _
        // Predicated region
        $region17: #{tpu_custom_call.1} parent=11 // pred_check
          %p185 = pneg %p83
        $region18: #{tpu_custom_call.1} parent=11 // pred_check_branch
          %187 = sbr.rel (%p185) target = $region20
        $region19: #{tpu_custom_call.1} parent=11 // pred_region
          _
        $region20: #{tpu_custom_call.1} parent=11 // pred_fallthru
          _
        // Predicated region
        $region21: #{tpu_custom_call.1} parent=11 // pred_check
          %p188 = pneg %p104
        $region22: #{tpu_custom_call.1} parent=11 // pred_check_branch
          %190 = sbr.rel (%p188) target = $region24
        $region23: #{tpu_custom_call.1} parent=11 // pred_region
          _
        $region24: #{tpu_custom_call.1} parent=11 // pred_fallthru
          _
        // Predicated region
        $region25: #{tpu_custom_call.1} parent=11 // pred_check
          %p191 = pneg %p125
        $region26: #{tpu_custom_call.1} parent=11 // pred_check_branch
          %193 = sbr.rel (%p191) target = $region28
        $region27: #{tpu_custom_call.1} parent=11 // pred_region
          _
        $region28: #{tpu_custom_call.1} parent=11 // pred_fallthru
          _
      $region12: #{tpu_custom_call.1} parent=5 // pred_fallthru
        _
      %p194 = scmp.lt.s32.totalorder %s15, 3
      // Predicated region
      $region29: #{tpu_custom_call.1} parent=5 // pred_check
        %p195 = pneg %p194
      $region30: #{tpu_custom_call.1} parent=5 // pred_check_branch
        %197 = sbr.rel (%p195) target = $region32
      $region31: #{tpu_custom_call.1} parent=5 // pred_region
        // Predicated region
        $region33: #{tpu_custom_call.1} parent=31 // pred_check
          %p198 = pneg %p35
        $region34: #{tpu_custom_call.1} parent=31 // pred_check_branch
          %200 = sbr.rel (%p198) target = $region36
        $region35: #{tpu_custom_call.1} parent=31 // pred_region
          %p201 = scmp.lt.s32.totalorder %s15, 2
          %s202 = scalar_select %p201, %s15, 2
          %s203 = smul.addr %s202, 8
          %s204 = scalar_lea.vmem %s0, %s203
        $region36: #{tpu_custom_call.1} parent=31 // pred_fallthru
          _
      $region32: #{tpu_custom_call.1} parent=5 // pred_fallthru
        _
      %p205 = scmp.le.s32.totalorder 1, %s15
      %p206 = scmp.lt.s32.totalorder %s15, 4
      %p207 = pnand %p205, %p206
      %p208 = pneg %p207
      // Predicated region
      $region37: #{tpu_custom_call.1} parent=5 // pred_check
        _
      $region38: #{tpu_custom_call.1} parent=5 // pred_check_branch
        %210 = sbr.rel (%p207) target = $region40
      $region39: #{tpu_custom_call.1} parent=5 // pred_region
        %s211 = ssub.s32 %s15, 1
        %p212 = scmp.lt.s32.totalorder %s20, 2
        %s213 = scalar_select %p212, %s20, 2
        %s214 = smul.addr %s213, 8
        %s215 = scalar_lea.vmem %s0, %s214
        %p216 = pneg %p41
        %p217 = pneg %p38
        %p218 = pneg %p62
        %p219 = pneg %p59
        %p220 = pneg %p83
        %p221 = pneg %p80
        %p222 = pneg %p104
        %p223 = pneg %p101
        %p224 = pneg %p125
        %p225 = pneg %p122
        %p226 = pneg %p146
        %p227 = pneg %p143
        %p228 = pneg %p167
        %p229 = pneg %p164
        %p230 = scmp.lt.s32.totalorder %s20, 2
        %s231 = scalar_select %p230, %s20, 2
        %s232 = smul.addr %s231, 8
        %s233 = scalar_lea.vmem %s0, %s232
        %p234 = scmp.eq.s32.totalorder %s20, 0
        // Predicated region
        $region41: #{tpu_custom_call.1} parent=39 // pred_check
          %p235 = pneg %p234
        $region42: #{tpu_custom_call.1} parent=39 // pred_check_branch
          %237 = sbr.rel (%p235) target = $region44
        $region43: #{tpu_custom_call.1} parent=39 // pred_region
          %238 = vst [vmem:[#allocation2] sm:$0x1] 0.0
          %239 = vst [vmem:[#allocation3] sm:$0x1] 0.0
        $region44: #{tpu_custom_call.1} parent=39 // pred_fallthru
          _
        %v240 = vld [vmem:[%s233] sm:$0xff]
        %v241 = vld [vmem:[%s1] sm:$0xff]
        %v242 = vld [vmem:[%s1 + $0x8] sm:$0xff]
        %v243 = vld [vmem:[%s2] sm:$0x1]
        %v245 = vlaneseq
        %v246 = vshrl.u32 %v245, 7
        %v247 = vsub.s32 0, %v246
        %v248 = vrot.slane %v243, %v247
        %vm250 = vcmask 130048
        %v252 = vsel %vm250, %v240, 0
        %254 = vmatprep.subr.mxu0 0.0
        %255 = vmatpush1.msra.mxu0 0.0
        %256 = vmatprep.subr.mxu0 0.0
        %257 = vmatpush1.msra.mxu0 0.0
        %258 = vmatprep.subr.mxu0 0.0
        %259 = vmatpush1.msra.mxu0 0.0
        %260 = vmatprep.subr.mxu0 0.0
        %261 = vmatpush1.msra.mxu0 0.0
        %262 = vmatprep.subr.mxu0 0.0
        %263 = vmatpush1.msra.mxu0 0.0
        %264 = vmatprep.subr.mxu0 0.0
        %265 = vmatpush1.msra.mxu0 0.0
        %266 = vmatprep.subr.mxu0 0.0
        %267 = vmatpush1.msra.mxu0 0.0
        %268 = vmatprep.subr.mxu0 0.0
        %269 = vmatpush1.msra.mxu0 0.0
        %270 = vmatprep.subr.mxu0 0.0
        %271 = vmatpush1.msra.mxu0 0.0
        %272 = vmatprep.subr.mxu0 0.0
        %273 = vmatpush1.msra.mxu0 0.0
        %274 = vmatprep.subr.mxu0 0.0
        %275 = vmatpush1.msra.mxu0 0.0
        %276 = vmatprep.subr.mxu0 0.0
        %277 = vmatpush1.msra.mxu0 0.0
        %278 = vmatprep.subr.mxu0 0.0
        %279 = vmatpush1.msra.mxu0 0.0
        %280 = vmatprep.subr.mxu0 0.0
        %281 = vmatpush1.msra.mxu0 0.0
        %282 = vmatprep.subr.mxu0 0.0
        %283 = vmatpush1.msra.mxu0 %v242
        %284 = vmatprep.subr.mxu0 0.0
        %285 = vmatpush1.msra.mxu0 %v241
        %286 = vmatprep.subr.mxu0 0.0
        %287 = vmatpush2.msra.mxu0 0.0
        %288 = vmatprep.subr.mxu0 0.0
        %289 = vmatpush2.msra.mxu0 0.0
        %290 = vmatprep.subr.mxu0 0.0
        %291 = vmatpush2.msra.mxu0 0.0
        %292 = vmatprep.subr.mxu0 0.0
        %293 = vmatpush2.msra.mxu0 0.0
        %294 = vmatprep.subr.mxu0 0.0
        %295 = vmatpush2.msra.mxu0 0.0
        %296 = vmatprep.subr.mxu0 0.0
        %297 = vmatpush2.msra.mxu0 0.0
        %298 = vmatprep.subr.mxu0 0.0
        %299 = vmatpush2.msra.mxu0 0.0
        %300 = vmatprep.subr.mxu0 0.0
        %301 = vmatpush2.msra.mxu0 0.0
        %302 = vmatprep.subr.mxu0 0.0
        %303 = vmatpush2.msra.mxu0 0.0
        %304 = vmatprep.subr.mxu0 0.0
        %305 = vmatpush2.msra.mxu0 0.0
        %306 = vmatprep.subr.mxu0 0.0
        %307 = vmatpush2.msra.mxu0 0.0
        %308 = vmatprep.subr.mxu0 0.0
        %309 = vmatpush2.msra.mxu0 0.0
        %310 = vmatprep.subr.mxu0 0.0
        %311 = vmatpush2.msra.mxu0 0.0
        %312 = vmatprep.subr.mxu0 0.0
        %313 = vmatpush2.msra.mxu0 0.0
        %314 = vmatprep.subr.mxu0 0.0
        %315 = vmatpush2.msra.mxu0 0.0
        %316 = vmatprep.subr.mxu0 0.0
        %317 = vmatpush2.msra.mxu0 0.0
        %318 = vmatprep.mubr.f32.mxu0 0.0
        %319 = vmatmul.mubr.f32.gmra.mxu0 %v252
        %v320 = vpop.f32.mrf.mxu0
        %v321 = vadd.f32 %v248, %v320
        %v322 = vpop.f32.mrf.mxu0
        %323 = vdwg.mxu0
        %v324 = vmul.f32 %v321, 0.33
        %v325 = vmax.f32 %v321, %v324
        %p326 = scmp.lt.s32.totalorder %s20, 2
        // Predicated region
        $region45: #{tpu_custom_call.1} parent=39 // pred_check
          %p327 = pneg %p326
        $region46: #{tpu_custom_call.1} parent=39 // pred_check_branch
          %329 = sbr.rel (%p327) target = $region48
        $region47: #{tpu_custom_call.1} parent=39 // pred_region
          %v330 = vld [vmem:[#allocation2] sm:$0x1]
          %v331 = vrot.slane %v325, 4
          %v332 = vadd.f32 %v325, %v331
          %v333 = vrot.slane %v332, 2
          %v334 = vadd.f32 %v332, %v333
          %v335 = vrot.slane %v334, 1
          %v336 = vadd.f32 %v334, %v335
          %v337 = vadd.f32 %v330, %v336
          %338 = vst [vmem:[#allocation2] sm:$0x1] %v337
          %v339 = vld [vmem:[#allocation3] sm:$0x1]
          %v340 = vmul.f32 %v325, %v325
          %v341 = vrot.slane %v340, 4
          %v342 = vadd.f32 %v340, %v341
          %v343 = vrot.slane %v342, 2
          %v344 = vadd.f32 %v342, %v343
          %v345 = vrot.slane %v344, 1
          %v346 = vadd.f32 %v344, %v345
          %v347 = vadd.f32 %v339, %v346
          %348 = vst [vmem:[#allocation3] sm:$0x1] %v347
        $region48: #{tpu_custom_call.1} parent=39 // pred_fallthru
          _
        %p349 = scmp.eq.s32.totalorder %s20, 2
        // Predicated region
        $region49: #{tpu_custom_call.1} parent=39 // pred_check
          %p350 = pneg %p349
        $region50: #{tpu_custom_call.1} parent=39 // pred_check_branch
          %352 = sbr.rel (%p350) target = $region52
        $region51: #{tpu_custom_call.1} parent=39 // pred_region
          %v353 = vlaneseq
          %v354 = vshrl.u32 %v353, 7
          %s355 = smul.u32 %s20, 8
          %v356 = vstv %s355
          %v357 = vadd.s32 %v354, %v356
          %vm358 = vcmp.lt.s32.totalorder %v357, 20
          %v359 = vsel %vm358, 1, 0
          %vm360 = vcmp.eq.s32.totalorder %v359, 1
          %v361 = vsel %vm360, %v325, 0.0
          %v362 = vld [vmem:[#allocation2] sm:$0x1]
          %v363 = vrot.slane %v361, 4
          %v364 = vadd.f32 %v361, %v363
          %v365 = vrot.slane %v364, 2
          %v366 = vadd.f32 %v364, %v365
          %v367 = vrot.slane %v366, 1
          %v368 = vadd.f32 %v366, %v367
          %v369 = vadd.f32 %v362, %v368
          %v370 = vld [vmem:[#allocation3] sm:$0x1]
          %v371 = vmul.f32 %v361, %v361
          %v372 = vrot.slane %v371, 4
          %v373 = vadd.f32 %v371, %v372
          %v374 = vrot.slane %v373, 2
          %v375 = vadd.f32 %v373, %v374
          %v376 = vrot.slane %v375, 1
          %v377 = vadd.f32 %v375, %v376
          %v378 = vadd.f32 %v370, %v377
          %v379 = vmul.f32 %v369, 0.05
          %v380 = vmul.f32 %v378, 0.05
          %v381 = vmul.f32 %v379, %v379
          %v382 = vsub.f32 %v380, %v381
          %v383 = vmax.f32 %v382, 0.0
          %v384 = vld [vmem:[%s3] sm:$0x1]
          %v385 = vadd.f32 %v383, 1e-05
          %v386 = vrsqrt.pop %v385
          %v387 = vmul.f32 %v384, %v386
          %388 = vst [vmem:[#allocation4] sm:$0x1] %v387
          %v389 = vld [vmem:[%s4] sm:$0x1]
          %v390 = vmul.f32 %v379, %v387
          %v391 = vsub.f32 %v389, %v390
          %392 = vst [vmem:[#allocation6] sm:$0x1] %v391
        $region52: #{tpu_custom_call.1} parent=39 // pred_fallthru
          _
        // Predicated region
        $region53: #{tpu_custom_call.1} parent=39 // pred_check
          %p393 = pneg %p143
        $region54: #{tpu_custom_call.1} parent=39 // pred_check_branch
          %395 = sbr.rel (%p393) target = $region56
        $region55: #{tpu_custom_call.1} parent=39 // pred_region
          %s397 = ssub.s32 16, 16
          %398 = vsyncadd [#allocation5], %s397
          %s400 = sshll.u32 [#allocation4], 4
          %s401 = int_to_ptr.vmem [resolvable:$true] %s400
          %403 = dma.vmem_to_hbm [thread:$0]  %s401, 16, %s5, [#allocation5]
        $region56: #{tpu_custom_call.1} parent=39 // pred_fallthru
          _
        // Predicated region
        $region57: #{tpu_custom_call.1} parent=39 // pred_check
          %p404 = pneg %p164
        $region58: #{tpu_custom_call.1} parent=39 // pred_check_branch
          %406 = sbr.rel (%p404) target = $region60
        $region59: #{tpu_custom_call.1} parent=39 // pred_region
          %s408 = ssub.s32 16, 16
          %409 = vsyncadd [#allocation7], %s408
          %s411 = sshll.u32 [#allocation6], 4
          %s412 = int_to_ptr.vmem [resolvable:$true] %s411
          %414 = dma.vmem_to_hbm [thread:$0]  %s412, 16, %s6, [#allocation7]
        $region60: #{tpu_custom_call.1} parent=39 // pred_fallthru
          _
        // Predicated region
        $region61: #{tpu_custom_call.1} parent=39 // pred_check
          %p415 = pneg %p143
        $region62: #{tpu_custom_call.1} parent=39 // pred_check_branch
          %417 = sbr.rel (%p415) target = $region64
        $region63: #{tpu_custom_call.1} parent=39 // pred_region
          %418 = dma.done [#allocation5], 16
        $region64: #{tpu_custom_call.1} parent=39 // pred_fallthru
          _
        // Predicated region
        $region65: #{tpu_custom_call.1} parent=39 // pred_check
          %p419 = pneg %p164
        $region66: #{tpu_custom_call.1} parent=39 // pred_check_branch
          %421 = sbr.rel (%p419) target = $region68
        $region67: #{tpu_custom_call.1} parent=39 // pred_region
          %422 = dma.done [#allocation7], 16
        $region68: #{tpu_custom_call.1} parent=39 // pred_fallthru
          _
      $region40: #{tpu_custom_call.1} parent=5 // pred_fallthru
        _
      %p423 = scmp.le.s32.totalorder 2, %s15
      // Predicated region
      $region69: #{tpu_custom_call.1} parent=5 // pred_check
        %p424 = pneg %p423
      $region70: #{tpu_custom_call.1} parent=5 // pred_check_branch
        %426 = sbr.rel (%p424) target = $region72
      $region71: #{tpu_custom_call.1} parent=5 // pred_region
        %s427 = ssub.s32 %s15, 2
      $region72: #{tpu_custom_call.1} parent=5 // pred_fallthru
        _
    $region6: #{tpu_custom_call.1} parent=1 // loop_footer
      %s19 = sadd.s32 1, %s15
    $region7: #{tpu_custom_call.1} parent=1 // loop_footer_branch
      %14 = sbr.rel target = $region3
    $region8: #{tpu_custom_call.1} parent=1 // loop_exit
      _
    %428 = vsyncpa [#allocation5], 1
    %s429 = scalar_lea.sflag [#allocation5], 1
    %430 = vsyncpa %s429, 1
    %431 = vsyncpa [#allocation7], 1

</llo_original>
